<compile_context>
chip_gen: v7x
topology: tpu7x:2x2x1
jax: 0.10.0
libtpu: 0.0.40
codegen_flags: <defaults>
</compile_context>

<pallas_src>
import math

import jax
import jax.numpy as jnp
from jax import lax
from jax.experimental import pallas as pl
from jax.experimental.pallas import tpu as pltpu


def _round_up(x: int, m: int) -> int:
    return (x + m - 1) // m * m


# (tm, tn, tk) caps keyed on generation and "compute is bf16".
_TILE_TABLE = {
    "v5e":     {True: (512, 512, 2048), False: (512, 512, 1024)},
    "v6e":     {True: (1024, 1024, 512), False: (512, 1024, 512)},
    "v7x":     {True: (512, 512, 1024), False: (512, 512, 512)},
    "v5p":     {True: (512, 512, 1024), False: (512, 512, 512)},
    "unknown": {True: (512, 512, 1024), False: (512, 512, 512)},
}

_VMEM_LIMIT = {
    "v5e": 64 << 20,     # 128 MiB physical
    "v6e": 80 << 20,     # 128 MiB physical; hardest generation to feed
    "v7x": 48 << 20,     # 64 MiB physical per TC -> leave compiler headroom
    "v5p": 64 << 20,
    "unknown": 48 << 20,
}


def _detect_tpu_generation() -> str:
    try:
        kind = jax.devices()[0].device_kind.lower()
    except Exception:
        return "unknown"
    if "v6" in kind:
        return "v6e"
    if "v5" in kind and ("lite" in kind or "v5e" in kind):
        return "v5e"
    if "v5" in kind:
        return "v5p"
    if "v7" in kind or "7x" in kind:
        return "v7x"
    return "unknown"


# ----------------------------- kernels ------------------------------------ #

def _ffn_kernel_f32_out(x_ref, w_ref, b_ref, o_ref):
    """f32 output: accumulate directly into the resident output block.

    The output BlockSpec returns the same block index for every k, so o_ref
    stays in VMEM across the K axis -> no separate scratch accumulator and no
    epilogue copy.  Bias is used as the initial value (k == 0).
    """
    k = pl.program_id(2)

    @pl.when(k == 0)
    def _():
        o_ref[...] = jnp.broadcast_to(b_ref[...], o_ref.shape)

    o_ref[...] += jnp.dot(x_ref[...], w_ref[...],
                          preferred_element_type=jnp.float32)


def _ffn_kernel_scratch(x_ref, w_ref, b_ref, o_ref, acc_ref):
    """Non-f32 output: f32 VMEM accumulator, bias + cast in the epilogue."""
    k = pl.program_id(2)

    @pl.when(k == 0)
    def _():
        acc_ref[...] = jnp.zeros_like(acc_ref)

    acc_ref[...] += jnp.dot(x_ref[...], w_ref[...],
                            preferred_element_type=jnp.float32)

    @pl.when(k == pl.num_programs(2) - 1)
    def _():
        o_ref[...] = (acc_ref[...] + b_ref[...]).astype(o_ref.dtype)


# ------------------------------ module ------------------------------------ #

class FFN:
    """Pallas-TPU analogue of the PyTorch FFN module (Linear + xavier_uniform).

    Forward: y = x @ W^T + b, with W stored pre-transposed as (K, N).
    """

    def __init__(self, key, input_size, output_size, bias=True,
                 w_init_gain="linear", *, compute_dtype=None, tiles=None):
        self.input_size = int(input_size)
        self.output_size = int(output_size)
        self.generation = _detect_tpu_generation()
        self.vmem_limit_bytes = _VMEM_LIMIT[self.generation]

        # bf16 MXU inputs with f32 accumulation by default (2-4x faster and
        # half the X/W HBM traffic on the bf16-native MXU of v5e/v6e/v7x).
        # Pass compute_dtype=jnp.float32 for strict torch.nn.Linear numerics.
        if compute_dtype is None:
            compute_dtype = jnp.bfloat16
        self.compute_dtype = jnp.dtype(compute_dtype)
        self._is_bf16_compute = self.compute_dtype == jnp.dtype(jnp.bfloat16)

        # ---- parameter init (matches torch.nn.Linear + xavier_uniform_) ----
        gain = 1.0  # torch.nn.init.calculate_gain('linear') == 1.0
        w_limit = gain * math.sqrt(6.0 / (input_size + output_size))
        wkey, bkey = jax.random.split(key)
        # Pre-transposed (K, N): no transpose HLO at forward time.
        self.weight_t = jax.random.uniform(
            wkey, (input_size, output_size), dtype=jnp.float32,
            minval=-w_limit, maxval=w_limit)
        if bias:
            b_limit = 1.0 / math.sqrt(input_size)
            self.bias = jax.random.uniform(
                bkey, (output_size,), dtype=jnp.float32,
                minval=-b_limit, maxval=b_limit)
        else:
            self.bias = jnp.zeros((output_size,), dtype=jnp.float32)

        # ---- generation-aware tile selection ----
        if tiles is None:
            tiles = _TILE_TABLE[self.generation][self._is_bf16_compute]
        tm_cap, tn_cap, tk_cap = tiles

        n128 = _round_up(self.output_size, 128)
        k128 = _round_up(self.input_size, 128)
        tn = min(tn_cap, n128)
        tk = min(tk_cap, k128)

        # v7x: 2 TensorCores shard the "parallel" grid axes; make sure
        # grid_n >= 2 so small-M (decode) shapes do not idle a core.
        if self.generation == "v7x" and n128 >= 256 and n128 // tn < 2:
            tn = _round_up(pl.cdiv(n128, 2), 128)

        self.tm_cap = tm_cap
        self.tn = tn
        self.tk = tk
        self.n_pad = _round_up(self.output_size, tn)
        self.k_pad = _round_up(self.input_size, tk)

        # ---- one-time cast + pad of weight / bias (NOT per forward call) ----
        w = self.weight_t.astype(self.compute_dtype)
        if (self.k_pad, self.n_pad) != w.shape:
            w = jnp.pad(w, ((0, self.k_pad - self.input_size),
                            (0, self.n_pad - self.output_size)))
        self.w_prepared = w
        b = self.bias.reshape(1, self.output_size).astype(jnp.float32)
        if self.n_pad != self.output_size:
            b = jnp.pad(b, ((0, 0), (0, self.n_pad - self.output_size)))
        self.b_prepared = b

    def __call__(self, x, *, allow_small_fallback=True):
        *lead, in_size = x.shape
        assert in_size == self.input_size, (in_size, self.input_size)
        out_dtype = x.dtype
        m = math.prod(lead) if lead else 1
        x2d = x.reshape(m, in_size)

        # bf16 packs two rows per sublane -> round rows to 16 for dense vregs.
        row_align = 16 if self._is_bf16_compute else 8
        tm = min(self.tm_cap, _round_up(m, row_align))
        m_pad = _round_up(m, tm)
        grid = (m_pad // tm, self.n_pad // self.tn, self.k_pad // self.tk)

        # Tiny single-tile problems: pad/slice + pallas_call overhead would
        # dominate -> plain dot fast path.
        if (allow_small_fallback
                and grid == (1, 1, 1)
                and m_pad * self.n_pad * self.k_pad <= (1 << 21)):
            if self._is_bf16_compute:
                y = jnp.dot(x2d.astype(self.compute_dtype),
                            self.weight_t.astype(self.compute_dtype),
                            preferred_element_type=jnp.float32)
            else:
                y = jnp.dot(x2d, self.weight_t, precision=lax.Precision.HIGHEST)
            y = (y + self.bias).astype(out_dtype)
            return y.reshape(*lead, self.output_size)

        xc = x2d.astype(self.compute_dtype)
        if (m_pad, self.k_pad) != (m, in_size):
            xc = jnp.pad(xc, ((0, m_pad - m), (0, self.k_pad - in_size)))

        grid_m, grid_n, _ = grid
        csize = jnp.dtype(self.compute_dtype).itemsize
        cost = pl.CostEstimate(
            flops=2 * m_pad * self.n_pad * self.k_pad,
            transcendentals=0,
            # Include grid reuse factors: X streamed grid_n times, W grid_m times.
            bytes_accessed=(m_pad * self.k_pad * csize * grid_n
                            + self.k_pad * self.n_pad * csize * grid_m
                            + m_pad * self.n_pad * jnp.dtype(out_dtype).itemsize),
        )

        if jnp.dtype(out_dtype) == jnp.dtype(jnp.float32):
            kernel = _ffn_kernel_f32_out           # accumulate into o_ref
            scratch_shapes = ()
        else:
            kernel = _ffn_kernel_scratch           # f32 scratch + epilogue cast
            scratch_shapes = (pltpu.VMEM((tm, self.tn), jnp.float32),)

        out2d = pl.pallas_call(
            kernel,
            out_shape=jax.ShapeDtypeStruct((m_pad, self.n_pad), out_dtype),
            grid_spec=pltpu.PrefetchScalarGridSpec(
                num_scalar_prefetch=0,
                grid=grid,
                in_specs=[
                    pl.BlockSpec((tm, self.tk), lambda i, j, k: (i, k)),
                    pl.BlockSpec((self.tk, self.tn), lambda i, j, k: (k, j)),
                    pl.BlockSpec((1, self.tn), lambda i, j, k: (0, j)),
                ],
                out_specs=pl.BlockSpec((tm, self.tn), lambda i, j, k: (i, j)),
                scratch_shapes=scratch_shapes,
            ),
            compiler_params=pltpu.CompilerParams(
                dimension_semantics=("parallel", "parallel", "arbitrary"),
                vmem_limit_bytes=self.vmem_limit_bytes,
            ),
            cost_estimate=cost,
        )(xc, self.w_prepared, self.b_prepared)

        out2d = out2d[:m, :self.output_size]
        return out2d.reshape(*lead, self.output_size)


# ------------------------------- test -------------------------------------- #

if __name__ == "__main__":
    key = jax.random.PRNGKey(0)
    k_x, k_p, k_x2 = jax.random.split(key, 3)

    # 1) Module-spec shapes, strict f32 path (torch.nn.Linear parity).
    batch, seq, input_size, output_size = 2, 8, 32, 32
    x = jax.random.normal(k_x, (batch, seq, input_size), dtype=jnp.float32)

    ffn_f32 = FFN(k_p, input_size, output_size, compute_dtype=jnp.float32)
    ref = (jnp.dot(x.reshape(-1, input_size), ffn_f32.weight_t,
                   precision=lax.Precision.HIGHEST)
           .reshape(batch, seq, output_size) + ffn_f32.bias)

    out = ffn_f32(x, allow_small_fallback=False)   # force the Pallas kernel
    jax.block_until_ready(out)
    assert out.shape == (batch, seq, output_size)
    assert jnp.allclose(out, ref, atol=1e-4, rtol=1e-4), \
        float(jnp.max(jnp.abs(out - ref)))

    out_fast = ffn_f32(x)                          # small-problem fast path
    assert jnp.allclose(out_fast, ref, atol=1e-4, rtol=1e-4)

    # 2) Same shapes, default bf16-compute path (f32 accumulation).
    ffn_bf16 = FFN(k_p, input_size, output_size)   # compute_dtype defaults to bf16
    out_bf16 = ffn_bf16(x, allow_small_fallback=False)
    jax.block_until_ready(out_bf16)
    assert jnp.allclose(out_bf16, ref, atol=5e-2, rtol=5e-2)

    # 3) Multi-tile grid: K accumulation + N tiling + o_ref accumulator (f32 out).
    in2, out2 = 256, 384
    x2 = jax.random.normal(k_x2, (batch, seq, in2), dtype=jnp.float32)
    ffn2 = FFN(k_p, in2, out2, compute_dtype=jnp.float32, tiles=(64, 128, 128))
    ref2 = (jnp.dot(x2.reshape(-1, in2), ffn2.weight_t,
                    precision=lax.Precision.HIGHEST)
            .reshape(batch, seq, out2) + ffn2.bias)
    out2_ = ffn2(x2, allow_small_fallback=False)
    jax.block_until_ready(out2_)
    assert jnp.allclose(out2_, ref2, atol=1e-4, rtol=1e-4), \
        float(jnp.max(jnp.abs(out2_ - ref2)))

    # 4) bf16 activations / bf16 output: exercises the f32-scratch epilogue kernel.
    ffn3 = FFN(k_p, in2, out2, tiles=(64, 128, 128))   # bf16 compute
    out3 = ffn3(x2.astype(jnp.bfloat16), allow_small_fallback=False)
    jax.block_until_ready(out3)
    assert out3.dtype == jnp.bfloat16
    assert jnp.allclose(out3.astype(jnp.float32), ref2, atol=1e-1, rtol=1e-1)

    print("KERNEL_OK")
</pallas_src>

<mosaic_0001>
module attributes {stable_mosaic.version = 11 : i64} {
  func.func @_ffn_kernel_f32_out(%arg0: i32, %arg1: i32, %arg2: i32, %arg3: memref<16x128xf32, #tpu.memory_space<vmem>>, %arg4: memref<128x128xf32, #tpu.memory_space<vmem>>, %arg5: memref<1x128xf32, #tpu.memory_space<vmem>>, %arg6: memref<16x128xf32, #tpu.memory_space<vmem>>) attributes {dimension_semantics = [#tpu.dimension_semantics<parallel>, #tpu.dimension_semantics<parallel>, #tpu.dimension_semantics<arbitrary>], iteration_bounds = array<i64: 1, 1, 1>, scalar_prefetch = 0 : i64, scratch_operands = 0 : i64, tpu.core_type = #tpu.core_type<tc>, window_params = [{transform_indices = @transform_0, window_bounds = array<i64: 16, 128>}, {transform_indices = @transform_1, window_bounds = array<i64: 128, 128>}, {transform_indices = @transform_2, window_bounds = array<i64: 1, 128>}, {transform_indices = @transform_3, window_bounds = array<i64: 16, 128>}]} {
    %c0_i32 = arith.constant 0 : i32
    %0 = arith.cmpi eq, %arg2, %c0_i32 : i32
    %1 = arith.extui %0 : i1 to i32
    %c0_i32_0 = arith.constant 0 : i32
    %2 = arith.cmpi ne, %1, %c0_i32_0 : i32
    scf.if %2 {
      %c0_8 = arith.constant 0 : index
      %c0_9 = arith.constant 0 : index
      %9 = vector.load %arg5[%c0_8, %c0_9] : memref<1x128xf32, #tpu.memory_space<vmem>>, vector<1x128xf32>
      %10 = vector.shape_cast %9 : vector<1x128xf32> to vector<1x128xf32>
      %11 = vector.broadcast %10 : vector<1x128xf32> to vector<16x128xf32>
      %c0_10 = arith.constant 0 : index
      %c0_11 = arith.constant 0 : index
      %12 = vector.load %arg6[%c0_10, %c0_11] : memref<16x128xf32, #tpu.memory_space<vmem>>, vector<16x128xf32>
      tpu.vector_store %arg6[%c0_10, %c0_11], %11 {strides = array<i32>} : memref<16x128xf32, #tpu.memory_space<vmem>>, vector<16x128xf32>,
    } else {
    }
    %c0 = arith.constant 0 : index
    %c0_1 = arith.constant 0 : index
    %3 = vector.load %arg6[%c0, %c0_1] : memref<16x128xf32, #tpu.memory_space<vmem>>, vector<16x128xf32>
    %c0_2 = arith.constant 0 : index
    %c0_3 = arith.constant 0 : index
    %4 = vector.load %arg3[%c0_2, %c0_3] : memref<16x128xf32, #tpu.memory_space<vmem>>, vector<16x128xf32>
    %c0_4 = arith.constant 0 : index
    %c0_5 = arith.constant 0 : index
    %5 = vector.load %arg4[%c0_4, %c0_5] : memref<128x128xf32, #tpu.memory_space<vmem>>, vector<128x128xf32>
    %cst = arith.constant dense<0.000000e+00> : vector<16x128xf32>
    %6 = tpu.matmul %4, %5, %cst {dimension_numbers = #tpu.dot_dimension_numbers<[1], [0], [0], [1], [0, 0, 1, 1], [], []>} : vector<16x128xf32>, vector<128x128xf32>, vector<16x128xf32> -> vector<16x128xf32>
    %7 = arith.addf %3, %6 : vector<16x128xf32>
    %c0_6 = arith.constant 0 : index
    %c0_7 = arith.constant 0 : index
    %8 = vector.load %arg6[%c0_6, %c0_7] : memref<16x128xf32, #tpu.memory_space<vmem>>, vector<16x128xf32>
    tpu.vector_store %arg6[%c0_6, %c0_7], %7 {strides = array<i32>} : memref<16x128xf32, #tpu.memory_space<vmem>>, vector<16x128xf32>,
    return
  }
  func.func @transform_0(%arg0: i32, %arg1: i32, %arg2: i32) -> (i32, i32) {
    %c0_i32 = arith.constant 0 : i32
    return %arg0, %arg2 : i32, i32
  }
  func.func @transform_1(%arg0: i32, %arg1: i32, %arg2: i32) -> (i32, i32) {
    %c0_i32 = arith.constant 0 : i32
    return %arg2, %arg1 : i32, i32
  }
  func.func @transform_2(%arg0: i32, %arg1: i32, %arg2: i32) -> (i32, i32) {
    %c0_i32 = arith.constant 0 : i32
    %c0_i32_0 = arith.constant 0 : i32
    return %c0_i32, %arg1 : i32, i32
  }
  func.func @transform_3(%arg0: i32, %arg1: i32, %arg2: i32) -> (i32, i32) {
    %c0_i32 = arith.constant 0 : i32
    return %arg0, %arg1 : i32, i32
  }
}

</mosaic_0001>

<llo_original>
// kernel: tpu_custom_call.1
$region0: #{tpu_custom_call.1}
  #allocation0 [shape = 'u32[]', space=smem, size = 0x4, offset = 0x4, fixed_abs, tag = 'smem constant byte address 0x4 - core index']
  #allocation1 [shape = 'u32[144,128]{1,0:T(1,128)}', space=vmem, size = 0x12000, scoped, tag = 'internal scratch']
  %s0 = inlined_call_operand.hbm [shape: f32[16,128], index: 0, kind: input, shape index: {}]
  %s1 = inlined_call_operand.hbm [shape: f32[128,128], index: 1, kind: input, shape index: {}]
  %s2 = inlined_call_operand.vmem [shape: f32[1,128], index: 2, kind: input, shape index: {}]
  %s3 = inlined_call_operand.hbm [shape: f32[16,128], index: 3, kind: output, shape index: {}]
  %s4 = sld [smem:[#allocation0]]
  $region34: #{tpu_custom_call.1} parent=0
    _
  %s6 = ssub.s32 1, %s4
  %s7 = scalar_select 0, %s6, %s4
  $region1: #{tpu_custom_call.1} parent=0
    #allocation2 [shape = 'u8[8192]{0}', space=vmem, size = 0x2000, scoped, tag = 'input window, operand 0, single buffered']
    #allocation3 [shape = 's32[1]{0}', space=sflag, size = 0x4, scoped, tag = 'scoped memory for tpu_custom_call.1']
    #allocation4 [shape = 's32[1]{0}', space=sflag, size = 0x4, scoped, tag = 'scoped memory for tpu_custom_call.1']
    #allocation5 [shape = 'u8[65536]{0}', space=vmem, size = 0x10000, scoped, tag = 'input window, operand 1, single buffered']
    #allocation6 [shape = 's32[1]{0}', space=sflag, size = 0x4, scoped, tag = 'scoped memory for tpu_custom_call.1']
    #allocation7 [shape = 'u8[8192]{0}', space=vmem, size = 0x2000, scoped, tag = 'output window, operand 0, single buffered']
    %8 = vsyncpa [#allocation3], 0
    %9 = vsyncpa [#allocation6], 0
    %10 = vsyncpa [#allocation4], 0
    // Predicated region
    $region2: #{tpu_custom_call.1} parent=1 // pred_check
      _
    $region3: #{tpu_custom_call.1} parent=1 // pred_check_branch
      %12 = sbr.rel (0) target = $region5
    $region4: #{tpu_custom_call.1} parent=1 // pred_region
      %s14 = ssub.s32 256, 256
      %15 = vsyncadd [#allocation3], %s14
      %s16 = sshll.u32 [#allocation2], 4
      %s17 = int_to_ptr.vmem [resolvable:$true] %s16
      %22 = dma.hbm_to_vmem [thread:$0]  %s0, 256, %s17, [#allocation3], 128, 128, 8
    $region5: #{tpu_custom_call.1} parent=1 // pred_fallthru
      _
    // Predicated region
    $region6: #{tpu_custom_call.1} parent=1 // pred_check
      _
    $region7: #{tpu_custom_call.1} parent=1 // pred_check_branch
      %24 = sbr.rel (0) target = $region9
    $region8: #{tpu_custom_call.1} parent=1 // pred_region
      %s26 = ssub.s32 2048, 2048
      %27 = vsyncadd [#allocation6], %s26
      %s28 = sshll.u32 [#allocation5], 4
      %s29 = int_to_ptr.vmem [resolvable:$true] %s28
      %34 = dma.hbm_to_vmem [thread:$0]  %s1, 2048, %s29, [#allocation6], 128, 128, 8
    $region9: #{tpu_custom_call.1} parent=1 // pred_fallthru
      _
    // Predicated region
    $region10: #{tpu_custom_call.1} parent=1 // pred_check
      _
    $region11: #{tpu_custom_call.1} parent=1 // pred_check_branch
      %36 = sbr.rel (0) target = $region13
    $region12: #{tpu_custom_call.1} parent=1 // pred_region
      _
    $region13: #{tpu_custom_call.1} parent=1 // pred_fallthru
      _
    // Predicated region
    $region14: #{tpu_custom_call.1} parent=1 // pred_check
      _
    $region15: #{tpu_custom_call.1} parent=1 // pred_check_branch
      %38 = sbr.rel (0) target = $region17
    $region16: #{tpu_custom_call.1} parent=1 // pred_region
      %39 = dma.done [#allocation3], 256
    $region17: #{tpu_custom_call.1} parent=1 // pred_fallthru
      _
    // Predicated region
    $region18: #{tpu_custom_call.1} parent=1 // pred_check
      _
    $region19: #{tpu_custom_call.1} parent=1 // pred_check_branch
      %41 = sbr.rel (0) target = $region21
    $region20: #{tpu_custom_call.1} parent=1 // pred_region
      %42 = dma.done [#allocation6], 2048
    $region21: #{tpu_custom_call.1} parent=1 // pred_fallthru
      _
    %p43 = scmp.eq.s32.totalorder 0, 0
    // Predicated region
    $region22: #{tpu_custom_call.1} parent=1 // pred_check
      %p44 = pneg %p43
    $region23: #{tpu_custom_call.1} parent=1 // pred_check_branch
      %46 = sbr.rel (%p44) target = $region25
    $region24: #{tpu_custom_call.1} parent=1 // pred_region
      %v47 = vld [vmem:[%s2] sm:$0x1]
      %v49 = vlaneseq
      %v50 = vshrl.u32 %v49, 7
      %v51 = vsub.s32 0, %v50
      %v52 = vrot.slane %v47, %v51
      %54 = vst [vmem:[#allocation7] sm:$0xff] %v52
      %55 = vst [vmem:[#allocation7 + $0x8] sm:$0xff] %v52
    $region25: #{tpu_custom_call.1} parent=1 // pred_fallthru
      _
    %v56 = vld [vmem:[#allocation7] sm:$0xff]
    %v57 = vld [vmem:[#allocation7 + $0x8] sm:$0xff]
    %v58 = vld [vmem:[#allocation2] sm:$0xff]
    %v59 = vld [vmem:[#allocation2 + $0x8] sm:$0xff]
    %v60 = vld [vmem:[#allocation5] sm:$0xff]
    %v61 = vld [vmem:[#allocation5 + $0x8] sm:$0xff]
    %v62 = vld [vmem:[#allocation5 + $0x10] sm:$0xff]
    %v63 = vld [vmem:[#allocation5 + $0x18] sm:$0xff]
    %v64 = vld [vmem:[#allocation5 + $0x20] sm:$0xff]
    %v65 = vld [vmem:[#allocation5 + $0x28] sm:$0xff]
    %v66 = vld [vmem:[#allocation5 + $0x30] sm:$0xff]
    %v67 = vld [vmem:[#allocation5 + $0x38] sm:$0xff]
    %v68 = vld [vmem:[#allocation5 + $0x40] sm:$0xff]
    %v69 = vld [vmem:[#allocation5 + $0x48] sm:$0xff]
    %v70 = vld [vmem:[#allocation5 + $0x50] sm:$0xff]
    %v71 = vld [vmem:[#allocation5 + $0x58] sm:$0xff]
    %v72 = vld [vmem:[#allocation5 + $0x60] sm:$0xff]
    %v73 = vld [vmem:[#allocation5 + $0x68] sm:$0xff]
    %v74 = vld [vmem:[#allocation5 + $0x70] sm:$0xff]
    %v75 = vld [vmem:[#allocation5 + $0x78] sm:$0xff]
    %76 = vmatprep.subr.mxu0 0.0
    %77 = vmatpush1.msra.mxu0 %v60
    %78 = vmatprep.subr.mxu0 0.0
    %79 = vmatpush1.msra.mxu0 %v61
    %80 = vmatprep.subr.mxu0 0.0
    %81 = vmatpush1.msra.mxu0 %v62
    %82 = vmatprep.subr.mxu0 0.0
    %83 = vmatpush1.msra.mxu0 %v63
    %84 = vmatprep.subr.mxu0 0.0
    %85 = vmatpush1.msra.mxu0 %v64
    %86 = vmatprep.subr.mxu0 0.0
    %87 = vmatpush1.msra.mxu0 %v65
    %88 = vmatprep.subr.mxu0 0.0
    %89 = vmatpush1.msra.mxu0 %v66
    %90 = vmatprep.subr.mxu0 0.0
    %91 = vmatpush1.msra.mxu0 %v67
    %92 = vmatprep.subr.mxu0 0.0
    %93 = vmatpush1.msra.mxu0 %v68
    %94 = vmatprep.subr.mxu0 0.0
    %95 = vmatpush1.msra.mxu0 %v69
    %96 = vmatprep.subr.mxu0 0.0
    %97 = vmatpush1.msra.mxu0 %v70
    %98 = vmatprep.subr.mxu0 0.0
    %99 = vmatpush1.msra.mxu0 %v71
    %100 = vmatprep.subr.mxu0 0.0
    %101 = vmatpush1.msra.mxu0 %v72
    %102 = vmatprep.subr.mxu0 0.0
    %103 = vmatpush1.msra.mxu0 %v73
    %104 = vmatprep.subr.mxu0 0.0
    %105 = vmatpush1.msra.mxu0 %v74
    %106 = vmatprep.subr.mxu0 0.0
    %107 = vmatpush1.msra.mxu0 %v75
    %108 = vmatprep.subr.mxu0 0.0
    %109 = vmatpush1.msra.mxu0 0.0
    %110 = vmatprep.subr.mxu0 0.0
    %111 = vmatpush1.msra.mxu0 0.0
    %112 = vmatprep.subr.mxu0 0.0
    %113 = vmatpush1.msra.mxu0 0.0
    %114 = vmatprep.subr.mxu0 0.0
    %115 = vmatpush1.msra.mxu0 0.0
    %116 = vmatprep.subr.mxu0 0.0
    %117 = vmatpush1.msra.mxu0 0.0
    %118 = vmatprep.subr.mxu0 0.0
    %119 = vmatpush1.msra.mxu0 0.0
    %120 = vmatprep.subr.mxu0 0.0
    %121 = vmatpush1.msra.mxu0 0.0
    %122 = vmatprep.subr.mxu0 0.0
    %123 = vmatpush1.msra.mxu0 0.0
    %124 = vmatprep.subr.mxu0 0.0
    %125 = vmatpush1.msra.mxu0 0.0
    %126 = vmatprep.subr.mxu0 0.0
    %127 = vmatpush1.msra.mxu0 0.0
    %128 = vmatprep.subr.mxu0 0.0
    %129 = vmatpush1.msra.mxu0 0.0
    %130 = vmatprep.subr.mxu0 0.0
    %131 = vmatpush1.msra.mxu0 0.0
    %132 = vmatprep.subr.mxu0 0.0
    %133 = vmatpush1.msra.mxu0 0.0
    %134 = vmatprep.subr.mxu0 0.0
    %135 = vmatpush1.msra.mxu0 0.0
    %136 = vmatprep.subr.mxu0 0.0
    %137 = vmatpush1.msra.mxu0 0.0
    %138 = vmatprep.subr.mxu0 0.0
    %139 = vmatpush1.msra.mxu0 0.0
    %140 = vmatprep.mubr.f32.mxu0 0.0
    %141 = vmatmul.mubr.f32.gmra.mrb[0].mxu0 %v58
    %v142 = vpop.f32.mrb[0].mxu0
    %v143 = vadd.f32 0.0, %v142
    %v144 = vpop.f32.mrb[0].mxu0
    %145 = vmatprep.mubr.f32.mxu0 0.0
    %146 = vmatmul.mubr.f32.gmra.mrb[0].mxu0 %v59
    %v147 = vpop.f32.mrb[0].mxu0
    %v148 = vadd.f32 0.0, %v147
    %v149 = vpop.f32.mrb[0].mxu0
    %150 = vdwg.mxu0
    %v151 = vadd.f32 %v56, %v143
    %v152 = vadd.f32 %v57, %v148
    %153 = vst [vmem:[#allocation7] sm:$0xff] %v151
    %154 = vst [vmem:[#allocation7 + $0x8] sm:$0xff] %v152
    // Predicated region
    $region26: #{tpu_custom_call.1} parent=1 // pred_check
      _
    $region27: #{tpu_custom_call.1} parent=1 // pred_check_branch
      %156 = sbr.rel (0) target = $region29
    $region28: #{tpu_custom_call.1} parent=1 // pred_region
      %s158 = ssub.s32 256, 256
      %159 = vsyncadd [#allocation4], %s158
      %s160 = sshll.u32 [#allocation7], 4
      %s161 = int_to_ptr.vmem [resolvable:$true] %s160
      %166 = dma.vmem_to_hbm [thread:$0]  %s161, 256, %s3, [#allocation4], 128, 128, 8
    $region29: #{tpu_custom_call.1} parent=1 // pred_fallthru
      _
    // Predicated region
    $region30: #{tpu_custom_call.1} parent=1 // pred_check
      _
    $region31: #{tpu_custom_call.1} parent=1 // pred_check_branch
      %168 = sbr.rel (0) target = $region33
    $region32: #{tpu_custom_call.1} parent=1 // pred_region
      %169 = dma.done [#allocation4], 256
    $region33: #{tpu_custom_call.1} parent=1 // pred_fallthru
      _
    %170 = vsyncpa [#allocation3], 1
    %171 = vsyncpa [#allocation6], 1
    %172 = vsyncpa [#allocation4], 1

</llo_original>
